<compile_context>
chip_gen: v7x
topology: tpu7x:2x2x1
jax: 0.10.0
libtpu: 0.0.40
codegen_flags: <defaults>
</compile_context>

<pallas_src>
import functools

import numpy as np

import jax
import jax.numpy as jnp
from jax.experimental import pallas as pl
from jax.experimental.pallas import tpu as pltpu

_LANE = 128     # vreg lane width
_SUBLANE = 8    # f32 sublane width


def _round_up(n, m):
    return ((n + m - 1) // m) * m


def _pick_batch_tile(batch, batch_tile):
    """Largest tile <= batch_tile that still gives >= 2 grid steps when B allows it."""
    half = _round_up(max(1, -(-batch // 2)), _SUBLANE)      # ceil(B/2), sublane-aligned
    tb = max(_SUBLANE, min(batch_tile, half))
    return _round_up(tb, _SUBLANE)


def _decoder_kernel(num_hidden, compute_dtype, *refs):
    """Full forward pass on one batch tile.

    refs = (code, w_hidden_0 .. w_hidden_{n-1}, w_out, b_out, blockP, out)
    Hidden/output feature dims are pre-padded to multiples of 128 lanes by the wrapper, so
    every matmul, reduction and the single output store below are full lane width.
    """
    code_ref = refs[0]
    hidden_w_refs = refs[1:1 + num_hidden]
    w_out_ref = refs[1 + num_hidden]
    b_out_ref = refs[2 + num_hidden]
    p_ref = refs[3 + num_hidden]        # (Dp, Dp) block-membership matrix (f32)
    out_ref = refs[4 + num_hidden]

    def mxu_dot(a, b):
        return jnp.dot(a.astype(compute_dtype), b.astype(compute_dtype),
                       preferred_element_type=jnp.float32)

    # Hidden stack: Linear(bias=False) + Sigmoid.  Padded input features multiply
    # zero-padded weight rows, so padded activation columns (sigmoid(0) = 0.5) never
    # leak into valid outputs of the next layer.
    # sigmoid(x) == 0.5*tanh(0.5*x)+0.5 -> one EUP push per element instead of exp+recip.
    h = code_ref[...]
    for w_ref in hidden_w_refs:
        y = mxu_dot(h, w_ref[...]).astype(compute_dtype)
        h = 0.5 * jnp.tanh(0.5 * y) + 0.5

    # MultiType output layer: fused matmul + bias, then segmented per-block softmax.
    # Padded logit columns are exactly 0 (zero weight cols, zero bias pad).
    logits = mxu_dot(h, w_out_ref[...]) + b_out_ref[...]

    # One per-row shift (softmax is invariant to a per-row constant within every block)
    # -> a single full-width XLU reduction instead of one reduce per narrow block.
    row_max = jnp.max(logits, axis=-1, keepdims=True)
    e = jnp.exp(logits - row_max)

    # Per-column denominator = sum of e over that column's block, as one tiny f32 MXU
    # contraction against the 0/1 block-membership matrix.  Padded columns are their own
    # 1-wide blocks in P, so no masking or denominator correction is needed; their outputs
    # are finite garbage that the wrapper slices off.
    denom = jnp.dot(e, p_ref[...], preferred_element_type=jnp.float32)

    # Single lane-dense store of the whole (tb, Dp) tile.
    out_ref[...] = (e * pl.reciprocal(denom, approx=True)).astype(out_ref.dtype)


def decoder_forward(code, hidden_weights, w_out, b_out, block_sizes, *,
                    batch_tile=1024,
                    param_dtype=jnp.float32,
                    compute_dtype=jnp.float32,
                    out_dtype=jnp.float32):
    """code: [B, z]; hidden_weights: list of [in, out] (pre-transposed vs nn.Linear);
    w_out: [H, sum(blocks)]; b_out: [1, sum(blocks)]; block_sizes: per-categorical sizes.

    On v6e/v7x, param_dtype=compute_dtype=jnp.bfloat16 halves weight bytes, doubles MXU rate
    and runs the sigmoid stack on the bf16 EUP path; keep f32 on v5e (no bf16 VPU/EUP) or
    when exact f32 parity is needed.  out_dtype=jnp.bfloat16 halves output HBM writeback if
    downstream accepts bf16 probabilities.
    """
    B, z = code.shape
    d_out = sum(block_sizes)
    num_hidden = len(hidden_weights)

    # ---- lane-pad hidden/output feature dims to multiples of 128 (z stays natural) ----
    hdims_p = [_round_up(w.shape[1], _LANE) for w in hidden_weights]
    dp = _round_up(d_out, _LANE)

    # ---- batch tiling (>= 2 grid steps when possible; remainder rows padded, not dropped) ----
    tb = _pick_batch_tile(B, batch_tile)
    bp = _round_up(B, tb)
    grid = (bp // tb,)

    code_p = code.astype(jnp.float32)
    if bp != B:
        code_p = jnp.pad(code_p, ((0, bp - B), (0, 0)))

    ws_p = []
    prev_p = z                                   # first-layer K dim kept at natural z
    for w, po in zip(hidden_weights, hdims_p):
        ws_p.append(jnp.pad(w, ((0, prev_p - w.shape[0]), (0, po - w.shape[1])))
                    .astype(param_dtype))
        prev_p = po
    w_out_p = jnp.pad(w_out, ((0, prev_p - w_out.shape[0]), (0, dp - d_out))) \
                 .astype(param_dtype)
    b_out_p = jnp.pad(b_out.astype(jnp.float32), ((0, 0), (0, dp - d_out)))

    # Block-membership matrix: P[c, c'] = 1 iff columns c and c' are in the same categorical
    # block.  Each padded column is its own 1-wide block so no in-kernel masking is needed.
    # Kept in f32 (softmax normalization accuracy) regardless of param/compute dtype.
    P = np.zeros((dp, dp), np.float32)
    s0 = 0
    for s in block_sizes:
        P[s0:s0 + s, s0:s0 + s] = 1.0
        s0 += s
    for c in range(d_out, dp):
        P[c, c] = 1.0
    p_mat = jnp.asarray(P)

    kernel = functools.partial(_decoder_kernel, num_hidden, compute_dtype)

    in_specs = [pl.BlockSpec((tb, z), lambda i: (i, 0))]           # batch-tiled code
    for w in ws_p:                                                 # resident weights
        in_specs.append(pl.BlockSpec(w.shape, lambda i: (0, 0)))
    in_specs.append(pl.BlockSpec(w_out_p.shape, lambda i: (0, 0)))
    in_specs.append(pl.BlockSpec(b_out_p.shape, lambda i: (0, 0)))
    in_specs.append(pl.BlockSpec(p_mat.shape, lambda i: (0, 0)))

    out_padded = pl.pallas_call(
        kernel,
        out_shape=jax.ShapeDtypeStruct((bp, dp), out_dtype),
        grid_spec=pltpu.PrefetchScalarGridSpec(
            num_scalar_prefetch=0,
            grid=grid,
            in_specs=in_specs,
            out_specs=pl.BlockSpec((tb, dp), lambda i: (i, 0)),
        ),
        compiler_params=pltpu.CompilerParams(
            dimension_semantics=("parallel",),           # megacore-shardable on v7x
            vmem_limit_bytes=32 * 1024 * 1024,           # above v5e's 16 MiB scoped default,
                                                         # safe within v7x's 64 MiB physical
        ),
    )(code_p, *ws_p, w_out_p, b_out_p, p_mat)

    return out_padded[:B, :d_out]


def decoder_reference(code, hidden_weights, w_out, b_out, block_sizes):
    h = code
    for w in hidden_weights:
        h = jax.nn.sigmoid(h @ w)
    logits = h @ w_out + b_out
    outs, start = [], 0
    for s in block_sizes:
        outs.append(jax.nn.softmax(logits[:, start:start + s], axis=-1))
        start += s
    return jnp.concatenate(outs, axis=-1)


if __name__ == "__main__":
    # Small, forward-consistent shapes (batch big enough for a 2-step grid).
    batch = 256
    z_size = 16
    hidden_sizes = [32, 24]
    output_size = [3, 5, 2, 4]  # MultiType: list of categorical variable sizes

    key = jax.random.PRNGKey(0)
    k_code, k_w, k_b = jax.random.split(key, 3)

    code = jax.random.normal(k_code, (batch, z_size), dtype=jnp.float32)

    # Deterministic parameter init (stored as [in, out], i.e. pre-transposed vs nn.Linear).
    hidden_weights = []
    prev = z_size
    for li, hs in enumerate(hidden_sizes):
        kk = jax.random.fold_in(k_w, li)
        hidden_weights.append(
            jax.random.normal(kk, (prev, hs), dtype=jnp.float32) * 0.1)
        prev = hs

    d_out = sum(output_size)
    w_out = jax.random.normal(jax.random.fold_in(k_w, 100),
                              (prev, d_out), dtype=jnp.float32) * 0.1
    b_out = jax.random.normal(k_b, (1, d_out), dtype=jnp.float32) * 0.1

    out = decoder_forward(code, hidden_weights, w_out, b_out, output_size)
    out = jax.block_until_ready(out)

    ref = decoder_reference(code, hidden_weights, w_out, b_out, output_size)
    assert out.shape == (batch, d_out)
    # Tolerance accounts for the approximate EUP reciprocal in the softmax divide.
    assert jnp.allclose(out, ref, atol=5e-3, rtol=5e-3), "mismatch vs reference"

    print("KERNEL_OK")
</pallas_src>

<mosaic_0001>
module attributes {stable_mosaic.version = 11 : i64} {
  func.func @_decoder_kernel(%arg0: i32, %arg1: memref<128x16xf32, #tpu.memory_space<vmem>>, %arg2: memref<16x128xf32, #tpu.memory_space<vmem>>, %arg3: memref<128x128xf32, #tpu.memory_space<vmem>>, %arg4: memref<128x128xf32, #tpu.memory_space<vmem>>, %arg5: memref<1x128xf32, #tpu.memory_space<vmem>>, %arg6: memref<128x128xf32, #tpu.memory_space<vmem>>, %arg7: memref<128x128xf32, #tpu.memory_space<vmem>>) attributes {dimension_semantics = [#tpu.dimension_semantics<parallel>], iteration_bounds = array<i64: 2>, scalar_prefetch = 0 : i64, scratch_operands = 0 : i64, tpu.core_type = #tpu.core_type<tc>, window_params = [{transform_indices = @transform_0, window_bounds = array<i64: 128, 16>}, {pipeline_mode = #tpu.pipeline_mode<synchronous>, transform_indices = @transform_1, window_bounds = array<i64: 16, 128>}, {pipeline_mode = #tpu.pipeline_mode<synchronous>, transform_indices = @transform_2, window_bounds = array<i64: 128, 128>}, {pipeline_mode = #tpu.pipeline_mode<synchronous>, transform_indices = @transform_3, window_bounds = array<i64: 128, 128>}, {pipeline_mode = #tpu.pipeline_mode<synchronous>, transform_indices = @transform_4, window_bounds = array<i64: 1, 128>}, {pipeline_mode = #tpu.pipeline_mode<synchronous>, transform_indices = @transform_5, window_bounds = array<i64: 128, 128>}, {transform_indices = @transform_6, window_bounds = array<i64: 128, 128>}]} {
    %c0 = arith.constant 0 : index
    %c0_0 = arith.constant 0 : index
    %0 = vector.load %arg1[%c0, %c0_0] : memref<128x16xf32, #tpu.memory_space<vmem>>, vector<128x16xf32>
    %c0_1 = arith.constant 0 : index
    %c0_2 = arith.constant 0 : index
    %1 = vector.load %arg2[%c0_1, %c0_2] : memref<16x128xf32, #tpu.memory_space<vmem>>, vector<16x128xf32>
    %cst = arith.constant dense<0.000000e+00> : vector<128x128xf32>
    %2 = tpu.matmul %0, %1, %cst {dimension_numbers = #tpu.dot_dimension_numbers<[1], [0], [0], [1], [0, 0, 1, 1], [], []>} : vector<128x16xf32>, vector<16x128xf32>, vector<128x128xf32> -> vector<128x128xf32>
    %cst_3 = arith.constant 5.000000e-01 : f32
    %3 = vector.broadcast %cst_3 : f32 to vector<128x128xf32>
    %4 = arith.mulf %3, %2 : vector<128x128xf32>
    %5 = math.tanh %4 : vector<128x128xf32>
    %cst_4 = arith.constant 5.000000e-01 : f32
    %6 = vector.broadcast %cst_4 : f32 to vector<128x128xf32>
    %7 = arith.mulf %6, %5 : vector<128x128xf32>
    %cst_5 = arith.constant 5.000000e-01 : f32
    %8 = vector.broadcast %cst_5 : f32 to vector<128x128xf32>
    %9 = arith.addf %7, %8 : vector<128x128xf32>
    %c0_6 = arith.constant 0 : index
    %c0_7 = arith.constant 0 : index
    %10 = vector.load %arg3[%c0_6, %c0_7] : memref<128x128xf32, #tpu.memory_space<vmem>>, vector<128x128xf32>
    %cst_8 = arith.constant dense<0.000000e+00> : vector<128x128xf32>
    %11 = tpu.matmul %9, %10, %cst_8 {dimension_numbers = #tpu.dot_dimension_numbers<[1], [0], [0], [1], [0, 0, 1, 1], [], []>} : vector<128x128xf32>, vector<128x128xf32>, vector<128x128xf32> -> vector<128x128xf32>
    %cst_9 = arith.constant 5.000000e-01 : f32
    %12 = vector.broadcast %cst_9 : f32 to vector<128x128xf32>
    %13 = arith.mulf %12, %11 : vector<128x128xf32>
    %14 = math.tanh %13 : vector<128x128xf32>
    %cst_10 = arith.constant 5.000000e-01 : f32
    %15 = vector.broadcast %cst_10 : f32 to vector<128x128xf32>
    %16 = arith.mulf %15, %14 : vector<128x128xf32>
    %cst_11 = arith.constant 5.000000e-01 : f32
    %17 = vector.broadcast %cst_11 : f32 to vector<128x128xf32>
    %18 = arith.addf %16, %17 : vector<128x128xf32>
    %c0_12 = arith.constant 0 : index
    %c0_13 = arith.constant 0 : index
    %19 = vector.load %arg4[%c0_12, %c0_13] : memref<128x128xf32, #tpu.memory_space<vmem>>, vector<128x128xf32>
    %cst_14 = arith.constant dense<0.000000e+00> : vector<128x128xf32>
    %20 = tpu.matmul %18, %19, %cst_14 {dimension_numbers = #tpu.dot_dimension_numbers<[1], [0], [0], [1], [0, 0, 1, 1], [], []>} : vector<128x128xf32>, vector<128x128xf32>, vector<128x128xf32> -> vector<128x128xf32>
    %c0_15 = arith.constant 0 : index
    %c0_16 = arith.constant 0 : index
    %21 = vector.load %arg5[%c0_15, %c0_16] : memref<1x128xf32, #tpu.memory_space<vmem>>, vector<1x128xf32>
    %22 = vector.broadcast %21 : vector<1x128xf32> to vector<128x128xf32>
    %23 = arith.addf %20, %22 : vector<128x128xf32>
    %cst_17 = arith.constant dense<0xFF800000> : vector<128xf32>
    %24 = vector.multi_reduction <maximumf>, %23, %cst_17 [1] : vector<128x128xf32> to vector<128xf32>
    %25 = vector.shape_cast %24 : vector<128xf32> to vector<128x1xf32>
    %26 = vector.broadcast %25 : vector<128x1xf32> to vector<128x128xf32>
    %27 = arith.subf %23, %26 : vector<128x128xf32>
    %28 = math.exp %27 : vector<128x128xf32>
    %c0_18 = arith.constant 0 : index
    %c0_19 = arith.constant 0 : index
    %29 = vector.load %arg6[%c0_18, %c0_19] : memref<128x128xf32, #tpu.memory_space<vmem>>, vector<128x128xf32>
    %cst_20 = arith.constant dense<0.000000e+00> : vector<128x128xf32>
    %30 = tpu.matmul %28, %29, %cst_20 {dimension_numbers = #tpu.dot_dimension_numbers<[1], [0], [0], [1], [0, 0, 1, 1], [], []>} : vector<128x128xf32>, vector<128x128xf32>, vector<128x128xf32> -> vector<128x128xf32>
    %31 = tpu.reciprocal %30 {approx = true} : vector<128x128xf32> -> vector<128x128xf32>
    %32 = arith.mulf %28, %31 : vector<128x128xf32>
    %c0_21 = arith.constant 0 : index
    %c0_22 = arith.constant 0 : index
    %33 = vector.load %arg7[%c0_21, %c0_22] : memref<128x128xf32, #tpu.memory_space<vmem>>, vector<128x128xf32>
    tpu.vector_store %arg7[%c0_21, %c0_22], %32 {strides = array<i32>} : memref<128x128xf32, #tpu.memory_space<vmem>>, vector<128x128xf32>,
    return
  }
  func.func @transform_0(%arg0: i32) -> (i32, i32) {
    %c0_i32 = arith.constant 0 : i32
    %c0_i32_0 = arith.constant 0 : i32
    return %arg0, %c0_i32 : i32, i32
  }
  func.func @transform_1(%arg0: i32) -> (i32, i32) {
    %c0_i32 = arith.constant 0 : i32
    %c0_i32_0 = arith.constant 0 : i32
    %c0_i32_1 = arith.constant 0 : i32
    return %c0_i32, %c0_i32_0 : i32, i32
  }
  func.func @transform_2(%arg0: i32) -> (i32, i32) {
    %c0_i32 = arith.constant 0 : i32
    %c0_i32_0 = arith.constant 0 : i32
    %c0_i32_1 = arith.constant 0 : i32
    return %c0_i32, %c0_i32_0 : i32, i32
  }
  func.func @transform_3(%arg0: i32) -> (i32, i32) {
    %c0_i32 = arith.constant 0 : i32
    %c0_i32_0 = arith.constant 0 : i32
    %c0_i32_1 = arith.constant 0 : i32
    return %c0_i32, %c0_i32_0 : i32, i32
  }
  func.func @transform_4(%arg0: i32) -> (i32, i32) {
    %c0_i32 = arith.constant 0 : i32
    %c0_i32_0 = arith.constant 0 : i32
    %c0_i32_1 = arith.constant 0 : i32
    return %c0_i32, %c0_i32_0 : i32, i32
  }
  func.func @transform_5(%arg0: i32) -> (i32, i32) {
    %c0_i32 = arith.constant 0 : i32
    %c0_i32_0 = arith.constant 0 : i32
    %c0_i32_1 = arith.constant 0 : i32
    return %c0_i32, %c0_i32_0 : i32, i32
  }
  func.func @transform_6(%arg0: i32) -> (i32, i32) {
    %c0_i32 = arith.constant 0 : i32
    %c0_i32_0 = arith.constant 0 : i32
    return %arg0, %c0_i32 : i32, i32
  }
}

</mosaic_0001>

<llo_original>
// kernel: tpu_custom_call.1
$region0: #{tpu_custom_call.1}
  #allocation0 [shape = 'u32[]', space=smem, size = 0x4, offset = 0x4, fixed_abs, tag = 'smem constant byte address 0x4 - core index']
  #allocation1 [shape = 'u32[144,128]{1,0:T(1,128)}', space=vmem, size = 0x12000, scoped, tag = 'internal scratch']
  %s0 = inlined_call_operand.vmem [shape: f32[256,16], index: 0, kind: input, shape index: {}]
  %s1 = inlined_call_operand.vmem [shape: f32[16,128], index: 1, kind: input, shape index: {}]
  %s2 = inlined_call_operand.vmem [shape: f32[128,128], index: 2, kind: input, shape index: {}]
  %s3 = inlined_call_operand.vmem [shape: f32[128,128], index: 3, kind: input, shape index: {}]
  %s4 = inlined_call_operand.vmem [shape: f32[1,128], index: 4, kind: input, shape index: {}]
  %s5 = inlined_call_operand.hbm [shape: f32[128,128], index: 5, kind: input, shape index: {}]
  %s6 = inlined_call_operand.hbm [shape: f32[256,128], index: 6, kind: output, shape index: {}]
  %s7 = sld [smem:[#allocation0]]
  $region61: #{tpu_custom_call.1} parent=0
    _
  %s9 = ssub.s32 1, %s7
  %s10 = scalar_select 0, %s9, %s7
  $region1: #{tpu_custom_call.1} parent=0
    #allocation2 [shape = 'u8[65536]{0}', space=vmem, size = 0x10000, scoped, tag = 'input window, operand 5, single buffered']
    #allocation3 [shape = 's32[2]{0}', space=sflag, size = 0x8, scoped, tag = 'scoped memory for tpu_custom_call.1']
    #allocation4 [shape = 's32[2]{0}', space=sflag, size = 0x8, scoped, tag = 'scoped memory for tpu_custom_call.1']
    #allocation5 [shape = 'u8[131072]{0}', space=vmem, size = 0x20000, scoped, tag = 'output window, operand 0']
    %11 = vsyncpa [#allocation3], 0
    %12 = vsyncpa [#allocation4], 0
    %s13 = scalar_lea.sflag [#allocation4], 1
    %14 = vsyncpa %s13, 0
    loop: start=0, step=1, limit=4
    $region2: #{tpu_custom_call.1} parent=1 // loop_pre_header
      _
    $region3: #{tpu_custom_call.1} parent=1 // loop_header
      %s16 = sphi 0, %s20
      %p17 = scmp.ge.s32.totalorder %s16, 4
      %s26 = sphi 0, %s28
      %s29 = sphi 0, %s26
      %s30 = sphi 0, %s29
      %s46 = sphi 0, %s30
      %s50 = sphi 0, %s50
      %s52 = sphi 0, %s50
      %s53 = sphi 0, %s52
      %s67 = sphi 0, %s53
      %s71 = sphi 0, %s71
      %s73 = sphi 0, %s71
      %s74 = sphi 0, %s73
      %s88 = sphi 0, %s74
      %s92 = sphi 0, %s92
      %s94 = sphi 0, %s92
      %s95 = sphi 0, %s94
      %s109 = sphi 0, %s95
      %s113 = sphi 0, %s113
      %s115 = sphi 0, %s113
      %s116 = sphi 0, %s115
      %s130 = sphi 0, %s116
      %s134 = sphi 0, %s134
      %s136 = sphi 0, %s134
      %s137 = sphi 0, %s136
      %s151 = sphi 0, %s137
      %s157 = sphi 0, %s159
      %s160 = sphi 0, %s157
      %s161 = sphi 0, %s160
      %s177 = sphi 0, %s161
    $region4: #{tpu_custom_call.1} parent=1 // loop_header_branch
      %19 = sbr.rel (%p17) target = $region8
    $region5: #{tpu_custom_call.1} parent=1 // loop_body
      %s21 = ssub.s32 %s16, 1
      %s22 = ssub.s32 %s16, 2
      %s23 = sadd.s32 %s16, 1
      %s24 = ssub.s32 %s16, %s23
      %p25 = scmp.eq.s32.totalorder %s24, 0
      %s27 = sadd.s32 %s26, 1
      %s28 = scalar_select %p25, %s26, %s27
      %p31 = pneg %p25
      %p32 = scmp.eq.s32.totalorder %s16, 1
      %p33 = por %p31, %p32
      %p34 = scmp.ne.s32.totalorder %s26, %s29
      %p35 = scmp.eq.s32.totalorder %s16, 0
      %p36 = por %p34, %p35
      %p37 = scmp.ne.s32.totalorder %s26, %s29
      %p38 = scmp.eq.s32.totalorder %s21, 1
      %p39 = por %p37, %p38
      %p40 = scmp.ne.s32.totalorder %s29, %s30
      %p41 = scmp.eq.s32.totalorder %s21, 0
      %p42 = por %p40, %p41
      %p43 = scmp.ne.s32.totalorder %s29, %s30
      %p44 = scmp.eq.s32.totalorder %s22, 1
      %p45 = por %p43, %p44
      %p47 = scmp.ne.s32.totalorder %s30, %s46
      %p48 = scmp.eq.s32.totalorder %s22, 0
      %p49 = por %p47, %p48
      %s51 = sadd.s32 %s50, 1
      %p54 = scmp.eq.s32.totalorder %s16, 1
      %p55 = scmp.ne.s32.totalorder %s50, %s52
      %p56 = scmp.eq.s32.totalorder %s16, 0
      %p57 = por %p55, %p56
      %p58 = scmp.ne.s32.totalorder %s50, %s52
      %p59 = scmp.eq.s32.totalorder %s21, 1
      %p60 = por %p58, %p59
      %p61 = scmp.ne.s32.totalorder %s52, %s53
      %p62 = scmp.eq.s32.totalorder %s21, 0
      %p63 = por %p61, %p62
      %p64 = scmp.ne.s32.totalorder %s52, %s53
      %p65 = scmp.eq.s32.totalorder %s22, 1
      %p66 = por %p64, %p65
      %p68 = scmp.ne.s32.totalorder %s53, %s67
      %p69 = scmp.eq.s32.totalorder %s22, 0
      %p70 = por %p68, %p69
      %s72 = sadd.s32 %s71, 1
      %p75 = scmp.eq.s32.totalorder %s16, 1
      %p76 = scmp.ne.s32.totalorder %s71, %s73
      %p77 = scmp.eq.s32.totalorder %s16, 0
      %p78 = por %p76, %p77
      %p79 = scmp.ne.s32.totalorder %s71, %s73
      %p80 = scmp.eq.s32.totalorder %s21, 1
      %p81 = por %p79, %p80
      %p82 = scmp.ne.s32.totalorder %s73, %s74
      %p83 = scmp.eq.s32.totalorder %s21, 0
      %p84 = por %p82, %p83
      %p85 = scmp.ne.s32.totalorder %s73, %s74
      %p86 = scmp.eq.s32.totalorder %s22, 1
      %p87 = por %p85, %p86
      %p89 = scmp.ne.s32.totalorder %s74, %s88
      %p90 = scmp.eq.s32.totalorder %s22, 0
      %p91 = por %p89, %p90
      %s93 = sadd.s32 %s92, 1
      %p96 = scmp.eq.s32.totalorder %s16, 1
      %p97 = scmp.ne.s32.totalorder %s92, %s94
      %p98 = scmp.eq.s32.totalorder %s16, 0
      %p99 = por %p97, %p98
      %p100 = scmp.ne.s32.totalorder %s92, %s94
      %p101 = scmp.eq.s32.totalorder %s21, 1
      %p102 = por %p100, %p101
      %p103 = scmp.ne.s32.totalorder %s94, %s95
      %p104 = scmp.eq.s32.totalorder %s21, 0
      %p105 = por %p103, %p104
      %p106 = scmp.ne.s32.totalorder %s94, %s95
      %p107 = scmp.eq.s32.totalorder %s22, 1
      %p108 = por %p106, %p107
      %p110 = scmp.ne.s32.totalorder %s95, %s109
      %p111 = scmp.eq.s32.totalorder %s22, 0
      %p112 = por %p110, %p111
      %s114 = sadd.s32 %s113, 1
      %p117 = scmp.eq.s32.totalorder %s16, 1
      %p118 = scmp.ne.s32.totalorder %s113, %s115
      %p119 = scmp.eq.s32.totalorder %s16, 0
      %p120 = por %p118, %p119
      %p121 = scmp.ne.s32.totalorder %s113, %s115
      %p122 = scmp.eq.s32.totalorder %s21, 1
      %p123 = por %p121, %p122
      %p124 = scmp.ne.s32.totalorder %s115, %s116
      %p125 = scmp.eq.s32.totalorder %s21, 0
      %p126 = por %p124, %p125
      %p127 = scmp.ne.s32.totalorder %s115, %s116
      %p128 = scmp.eq.s32.totalorder %s22, 1
      %p129 = por %p127, %p128
      %p131 = scmp.ne.s32.totalorder %s116, %s130
      %p132 = scmp.eq.s32.totalorder %s22, 0
      %p133 = por %p131, %p132
      %s135 = sadd.s32 %s134, 1
      %p138 = scmp.eq.s32.totalorder %s16, 1
      %p139 = scmp.ne.s32.totalorder %s134, %s136
      %p140 = scmp.eq.s32.totalorder %s16, 0
      %p141 = por %p139, %p140
      %p142 = scmp.ne.s32.totalorder %s134, %s136
      %p143 = scmp.eq.s32.totalorder %s21, 1
      %p144 = por %p142, %p143
      %p145 = scmp.ne.s32.totalorder %s136, %s137
      %p146 = scmp.eq.s32.totalorder %s21, 0
      %p147 = por %p145, %p146
      %p148 = scmp.ne.s32.totalorder %s136, %s137
      %p149 = scmp.eq.s32.totalorder %s22, 1
      %p150 = por %p148, %p149
      %p152 = scmp.ne.s32.totalorder %s137, %s151
      %p153 = scmp.eq.s32.totalorder %s22, 0
      %p154 = por %p152, %p153
      %s155 = ssub.s32 %s16, %s23
      %p156 = scmp.eq.s32.totalorder %s155, 0
      %s158 = sadd.s32 %s157, 1
      %s159 = scalar_select %p156, %s157, %s158
      %p162 = pneg %p156
      %p163 = scmp.eq.s32.totalorder %s16, 1
      %p164 = por %p162, %p163
      %p165 = scmp.ne.s32.totalorder %s157, %s160
      %p166 = scmp.eq.s32.totalorder %s16, 0
      %p167 = por %p165, %p166
      %p168 = scmp.ne.s32.totalorder %s157, %s160
      %p169 = scmp.eq.s32.totalorder %s21, 1
      %p170 = por %p168, %p169
      %p171 = scmp.ne.s32.totalorder %s160, %s161
      %p172 = scmp.eq.s32.totalorder %s21, 0
      %p173 = por %p171, %p172
      %p174 = scmp.ne.s32.totalorder %s160, %s161
      %p175 = scmp.eq.s32.totalorder %s22, 1
      %p176 = por %p174, %p175
      %p178 = scmp.ne.s32.totalorder %s161, %s177
      %p179 = scmp.eq.s32.totalorder %s22, 0
      %p180 = por %p178, %p179
      %p181 = scmp.le.s32.totalorder 1, %s16
      %p182 = scmp.lt.s32.totalorder %s16, 3
      %p183 = pnand %p181, %p182
      %p184 = pneg %p183
      // Predicated region
      $region9: #{tpu_custom_call.1} parent=5 // pred_check
        _
      $region10: #{tpu_custom_call.1} parent=5 // pred_check_branch
        %186 = sbr.rel (%p183) target = $region12
      $region11: #{tpu_custom_call.1} parent=5 // pred_region
        %s187 = ssub.s32 %s16, 1
        // Predicated region
        $region13: #{tpu_custom_call.1} parent=11 // pred_check
          %p188 = pneg %p63
        $region14: #{tpu_custom_call.1} parent=11 // pred_check_branch
          %190 = sbr.rel (%p188) target = $region16
        $region15: #{tpu_custom_call.1} parent=11 // pred_region
          _
        $region16: #{tpu_custom_call.1} parent=11 // pred_fallthru
          _
        // Predicated region
        $region17: #{tpu_custom_call.1} parent=11 // pred_check
          %p191 = pneg %p84
        $region18: #{tpu_custom_call.1} parent=11 // pred_check_branch
          %193 = sbr.rel (%p191) target = $region20
        $region19: #{tpu_custom_call.1} parent=11 // pred_region
          _
        $region20: #{tpu_custom_call.1} parent=11 // pred_fallthru
          _
        // Predicated region
        $region21: #{tpu_custom_call.1} parent=11 // pred_check
          %p194 = pneg %p105
        $region22: #{tpu_custom_call.1} parent=11 // pred_check_branch
          %196 = sbr.rel (%p194) target = $region24
        $region23: #{tpu_custom_call.1} parent=11 // pred_region
          _
        $region24: #{tpu_custom_call.1} parent=11 // pred_fallthru
          _
        // Predicated region
        $region25: #{tpu_custom_call.1} parent=11 // pred_check
          %p197 = pneg %p126
        $region26: #{tpu_custom_call.1} parent=11 // pred_check_branch
          %199 = sbr.rel (%p197) target = $region28
        $region27: #{tpu_custom_call.1} parent=11 // pred_region
          _
        $region28: #{tpu_custom_call.1} parent=11 // pred_fallthru
          _
        // Predicated region
        $region29: #{tpu_custom_call.1} parent=11 // pred_check
          %p200 = pneg %p147
        $region30: #{tpu_custom_call.1} parent=11 // pred_check_branch
          %202 = sbr.rel (%p200) target = $region32
        $region31: #{tpu_custom_call.1} parent=11 // pred_region
          %s204 = ssub.s32 2048, 2048
          %205 = vsyncadd [#allocation3], %s204
          %s206 = sshll.u32 [#allocation2], 4
          %s207 = int_to_ptr.vmem [resolvable:$true] %s206
          %212 = dma.hbm_to_vmem [thread:$0]  %s5, 2048, %s207, [#allocation3], 128, 128, 8
        $region32: #{tpu_custom_call.1} parent=11 // pred_fallthru
          _
      $region12: #{tpu_custom_call.1} parent=5 // pred_fallthru
        _
      %p213 = scmp.lt.s32.totalorder %s16, 2
      // Predicated region
      $region33: #{tpu_custom_call.1} parent=5 // pred_check
        %p214 = pneg %p213
      $region34: #{tpu_custom_call.1} parent=5 // pred_check_branch
        %216 = sbr.rel (%p214) target = $region36
      $region35: #{tpu_custom_call.1} parent=5 // pred_region
        // Predicated region
        $region37: #{tpu_custom_call.1} parent=35 // pred_check
          %p217 = pneg %p36
        $region38: #{tpu_custom_call.1} parent=35 // pred_check_branch
          %219 = sbr.rel (%p217) target = $region40
        $region39: #{tpu_custom_call.1} parent=35 // pred_region
          %s220 = smul.u32 16, %s16
          %p221 = scmp.lt.s32.totalorder %s220, 31
          %s222 = scalar_select %p221, %s220, 31
          %s223 = smul.addr %s222, 8
          %s224 = scalar_lea.vmem %s0, %s223
          %s225 = smul.u32 16, %s16
        $region40: #{tpu_custom_call.1} parent=35 // pred_fallthru
          _
      $region36: #{tpu_custom_call.1} parent=5 // pred_fallthru
        _
      %p226 = scmp.le.s32.totalorder 1, %s16
      %p227 = scmp.lt.s32.totalorder %s16, 3
      %p228 = pnand %p226, %p227
      %p229 = pneg %p228
      // Predicated region
      $region41: #{tpu_custom_call.1} parent=5 // pred_check
        _
      $region42: #{tpu_custom_call.1} parent=5 // pred_check_branch
        %231 = sbr.rel (%p228) target = $region44
      $region43: #{tpu_custom_call.1} parent=5 // pred_region
        %s232 = ssub.s32 %s16, 1
        // Predicated region
        $region45: #{tpu_custom_call.1} parent=43 // pred_check
          %p233 = pneg %p147
        $region46: #{tpu_custom_call.1} parent=43 // pred_check_branch
          %235 = sbr.rel (%p233) target = $region48
        $region47: #{tpu_custom_call.1} parent=43 // pred_region
          %236 = dma.done [#allocation3], 2048
        $region48: #{tpu_custom_call.1} parent=43 // pred_fallthru
          _
        %s237 = smul.u32 16, %s21
        %p238 = scmp.lt.s32.totalorder %s237, 31
        %s239 = scalar_select %p238, %s237, 31
        %s240 = smul.addr %s239, 8
        %s241 = scalar_lea.vmem %s0, %s240
        %p242 = pneg %p42
        %p243 = pneg %p39
        %p244 = pneg %p63
        %p245 = pneg %p60
        %p246 = pneg %p84
        %p247 = pneg %p81
        %p248 = pneg %p105
        %p249 = pneg %p102
        %p250 = pneg %p126
        %p251 = pneg %p123
        %p252 = pneg %p147
        %p253 = pneg %p144
        %p254 = pneg %p173
        %p255 = pneg %p170
        %s256 = sand.u32 %s160, 1
        %s257 = scalar_lea.sflag [#allocation4], %s256
        %s258 = sand.u32 %s160, 1
        %s259 = smul.addr %s258, 128
        %s260 = scalar_lea.vmem [#allocation5], %s259
        %s261 = smul.u32 16, %s21
        %p262 = scmp.lt.s32.totalorder %s261, 31
        %s263 = scalar_select %p262, %s261, 31
        %s264 = smul.addr %s263, 8
        %s265 = scalar_lea.vmem %s0, %s264
        %s266 = smul.u32 16, %s21
        %s267 = smul.u32 16, %s21
        %v268 = vld [vmem:[%s265] sm:$0xff]
        %v269 = vld [vmem:[%s265 + $0x8] sm:$0xff]
        %v270 = vld [vmem:[%s265 + $0x10] sm:$0xff]
        %v271 = vld [vmem:[%s265 + $0x18] sm:$0xff]
        %v272 = vld [vmem:[%s265 + $0x20] sm:$0xff]
        %v273 = vld [vmem:[%s265 + $0x28] sm:$0xff]
        %v274 = vld [vmem:[%s265 + $0x30] sm:$0xff]
        %v275 = vld [vmem:[%s265 + $0x38] sm:$0xff]
        %v276 = vld [vmem:[%s265 + $0x40] sm:$0xff]
        %v277 = vld [vmem:[%s265 + $0x48] sm:$0xff]
        %v278 = vld [vmem:[%s265 + $0x50] sm:$0xff]
        %v279 = vld [vmem:[%s265 + $0x58] sm:$0xff]
        %v280 = vld [vmem:[%s265 + $0x60] sm:$0xff]
        %v281 = vld [vmem:[%s265 + $0x68] sm:$0xff]
        %v282 = vld [vmem:[%s265 + $0x70] sm:$0xff]
        %v283 = vld [vmem:[%s265 + $0x78] sm:$0xff]
        %v284 = vld [vmem:[%s1] sm:$0xff]
        %v285 = vld [vmem:[%s1 + $0x8] sm:$0xff]
        %vm286 = vcmask 130048
        %v288 = vsel %vm286, %v268, 0
        %v291 = vsel %vm286, %v269, 0
        %v294 = vsel %vm286, %v270, 0
        %v297 = vsel %vm286, %v271, 0
        %v300 = vsel %vm286, %v272, 0
        %v303 = vsel %vm286, %v273, 0
        %v306 = vsel %vm286, %v274, 0
        %v309 = vsel %vm286, %v275, 0
        %v312 = vsel %vm286, %v276, 0
        %v315 = vsel %vm286, %v277, 0
        %v318 = vsel %vm286, %v278, 0
        %v321 = vsel %vm286, %v279, 0
        %v324 = vsel %vm286, %v280, 0
        %v327 = vsel %vm286, %v281, 0
        %v330 = vsel %vm286, %v282, 0
        %v333 = vsel %vm286, %v283, 0
        %335 = vmatprep.subr.mxu0 0.0
        %336 = vmatpush1.msra.mxu0 %v284
        %337 = vmatprep.subr.mxu0 0.0
        %338 = vmatpush1.msra.mxu0 %v285
        %339 = vmatprep.subr.mxu0 0.0
        %340 = vmatpush1.msra.mxu0 0.0
        %341 = vmatprep.subr.mxu0 0.0
        %342 = vmatpush1.msra.mxu0 0.0
        %343 = vmatprep.subr.mxu0 0.0
        %344 = vmatpush1.msra.mxu0 0.0
        %345 = vmatprep.subr.mxu0 0.0
        %346 = vmatpush1.msra.mxu0 0.0
        %347 = vmatprep.subr.mxu0 0.0
        %348 = vmatpush1.msra.mxu0 0.0
        %349 = vmatprep.subr.mxu0 0.0
        %350 = vmatpush1.msra.mxu0 0.0
        %351 = vmatprep.subr.mxu0 0.0
        %352 = vmatpush1.msra.mxu0 0.0
        %353 = vmatprep.subr.mxu0 0.0
        %354 = vmatpush1.msra.mxu0 0.0
        %355 = vmatprep.subr.mxu0 0.0
        %356 = vmatpush1.msra.mxu0 0.0
        %357 = vmatprep.subr.mxu0 0.0
        %358 = vmatpush1.msra.mxu0 0.0
        %359 = vmatprep.subr.mxu0 0.0
        %360 = vmatpush1.msra.mxu0 0.0
        %361 = vmatprep.subr.mxu0 0.0
        %362 = vmatpush1.msra.mxu0 0.0
        %363 = vmatprep.subr.mxu0 0.0
        %364 = vmatpush1.msra.mxu0 0.0
        %365 = vmatprep.subr.mxu0 0.0
        %366 = vmatpush1.msra.mxu0 0.0
        %367 = vmatprep.subr.mxu0 0.0
        %368 = vmatpush1.msra.mxu0 0.0
        %369 = vmatprep.subr.mxu0 0.0
        %370 = vmatpush1.msra.mxu0 0.0
        %371 = vmatprep.subr.mxu0 0.0
        %372 = vmatpush1.msra.mxu0 0.0
        %373 = vmatprep.subr.mxu0 0.0
        %374 = vmatpush1.msra.mxu0 0.0
        %375 = vmatprep.subr.mxu0 0.0
        %376 = vmatpush1.msra.mxu0 0.0
        %377 = vmatprep.subr.mxu0 0.0
        %378 = vmatpush1.msra.mxu0 0.0
        %379 = vmatprep.subr.mxu0 0.0
        %380 = vmatpush1.msra.mxu0 0.0
        %381 = vmatprep.subr.mxu0 0.0
        %382 = vmatpush1.msra.mxu0 0.0
        %383 = vmatprep.subr.mxu0 0.0
        %384 = vmatpush1.msra.mxu0 0.0
        %385 = vmatprep.subr.mxu0 0.0
        %386 = vmatpush1.msra.mxu0 0.0
        %387 = vmatprep.subr.mxu0 0.0
        %388 = vmatpush1.msra.mxu0 0.0
        %389 = vmatprep.subr.mxu0 0.0
        %390 = vmatpush1.msra.mxu0 0.0
        %391 = vmatprep.subr.mxu0 0.0
        %392 = vmatpush1.msra.mxu0 0.0
        %393 = vmatprep.subr.mxu0 0.0
        %394 = vmatpush1.msra.mxu0 0.0
        %395 = vmatprep.subr.mxu0 0.0
        %396 = vmatpush1.msra.mxu0 0.0
        %397 = vmatprep.subr.mxu0 0.0
        %398 = vmatpush1.msra.mxu0 0.0
        %399 = vmatprep.mubr.f32.mxu0 0.0
        %400 = vmatmul.mubr.f32.gmra.mrb[0].mxu0 %v288
        %v401 = vpop.f32.mrb[0].mxu0
        %v402 = vadd.f32 0.0, %v401
        %v403 = vpop.f32.mrb[0].mxu0
        %404 = vmatprep.mubr.f32.mxu0 0.0
        %405 = vmatmul.mubr.f32.gmra.mrb[0].mxu0 %v291
        %v406 = vpop.f32.mrb[0].mxu0
        %v407 = vadd.f32 0.0, %v406
        %v408 = vpop.f32.mrb[0].mxu0
        %409 = vmatprep.mubr.f32.mxu0 0.0
        %410 = vmatmul.mubr.f32.gmra.mrb[0].mxu0 %v294
        %v411 = vpop.f32.mrb[0].mxu0
        %v412 = vadd.f32 0.0, %v411
        %v413 = vpop.f32.mrb[0].mxu0
        %414 = vmatprep.mubr.f32.mxu0 0.0
        %415 = vmatmul.mubr.f32.gmra.mrb[0].mxu0 %v297
        %v416 = vpop.f32.mrb[0].mxu0
        %v417 = vadd.f32 0.0, %v416
        %v418 = vpop.f32.mrb[0].mxu0
        %419 = vmatprep.mubr.f32.mxu0 0.0
        %420 = vmatmul.mubr.f32.gmra.mrb[0].mxu0 %v300
        %v421 = vpop.f32.mrb[0].mxu0
        %v422 = vadd.f32 0.0, %v421
        %v423 = vpop.f32.mrb[0].mxu0
        %424 = vmatprep.mubr.f32.mxu0 0.0
        %425 = vmatmul.mubr.f32.gmra.mrb[0].mxu0 %v303
        %v426 = vpop.f32.mrb[0].mxu0
        %v427 = vadd.f32 0.0, %v426
        %v428 = vpop.f32.mrb[0].mxu0
        %429 = vmatprep.mubr.f32.mxu0 0.0
        %430 = vmatmul.mubr.f32.gmra.mrb[0].mxu0 %v306
        %v431 = vpop.f32.mrb[0].mxu0
        %v432 = vadd.f32 0.0, %v431
        %v433 = vpop.f32.mrb[0].mxu0
        %434 = vmatprep.mubr.f32.mxu0 0.0
        %435 = vmatmul.mubr.f32.gmra.mrb[0].mxu0 %v309
        %v436 = vpop.f32.mrb[0].mxu0
        %v437 = vadd.f32 0.0, %v436
        %v438 = vpop.f32.mrb[0].mxu0
        %439 = vmatprep.mubr.f32.mxu0 0.0
        %440 = vmatmul.mubr.f32.gmra.mrb[0].mxu0 %v312
        %v441 = vpop.f32.mrb[0].mxu0
        %v442 = vadd.f32 0.0, %v441
        %v443 = vpop.f32.mrb[0].mxu0
        %444 = vmatprep.mubr.f32.mxu0 0.0
        %445 = vmatmul.mubr.f32.gmra.mrb[0].mxu0 %v315
        %v446 = vpop.f32.mrb[0].mxu0
        %v447 = vadd.f32 0.0, %v446
        %v448 = vpop.f32.mrb[0].mxu0
        %449 = vmatprep.mubr.f32.mxu0 0.0
        %450 = vmatmul.mubr.f32.gmra.mrb[0].mxu0 %v318
        %v451 = vpop.f32.mrb[0].mxu0
        %v452 = vadd.f32 0.0, %v451
        %v453 = vpop.f32.mrb[0].mxu0
        %454 = vmatprep.mubr.f32.mxu0 0.0
        %455 = vmatmul.mubr.f32.gmra.mrb[0].mxu0 %v321
        %v456 = vpop.f32.mrb[0].mxu0
        %v457 = vadd.f32 0.0, %v456
        %v458 = vpop.f32.mrb[0].mxu0
        %459 = vmatprep.mubr.f32.mxu0 0.0
        %460 = vmatmul.mubr.f32.gmra.mrb[0].mxu0 %v324
        %v461 = vpop.f32.mrb[0].mxu0
        %v462 = vadd.f32 0.0, %v461
        %v463 = vpop.f32.mrb[0].mxu0
        %464 = vmatprep.mubr.f32.mxu0 0.0
        %465 = vmatmul.mubr.f32.gmra.mrb[0].mxu0 %v327
        %v466 = vpop.f32.mrb[0].mxu0
        %v467 = vadd.f32 0.0, %v466
        %v468 = vpop.f32.mrb[0].mxu0
        %469 = vmatprep.mubr.f32.mxu0 0.0
        %470 = vmatmul.mubr.f32.gmra.mrb[0].mxu0 %v330
        %v471 = vpop.f32.mrb[0].mxu0
        %v472 = vadd.f32 0.0, %v471
        %v473 = vpop.f32.mrb[0].mxu0
        %474 = vmatprep.mubr.f32.mxu0 0.0
        %475 = vmatmul.mubr.f32.gmra.mrb[0].mxu0 %v333
        %v476 = vpop.f32.mrb[0].mxu0
        %v477 = vadd.f32 0.0, %v476
        %v478 = vpop.f32.mrb[0].mxu0
        %479 = vdwg.mxu0
        %v480 = vmul.f32 %v402, 0.5
        %v481 = vmul.f32 %v407, 0.5
        %v482 = vmul.f32 %v412, 0.5
        %v483 = vmul.f32 %v417, 0.5
        %v484 = vmul.f32 %v422, 0.5
        %v485 = vmul.f32 %v427, 0.5
        %v486 = vmul.f32 %v432, 0.5
        %v487 = vmul.f32 %v437, 0.5
        %v488 = vmul.f32 %v442, 0.5
        %v489 = vmul.f32 %v447, 0.5
        %v490 = vmul.f32 %v452, 0.5
        %v491 = vmul.f32 %v457, 0.5
        %v492 = vmul.f32 %v462, 0.5
        %v493 = vmul.f32 %v467, 0.5
        %v494 = vmul.f32 %v472, 0.5
        %v495 = vmul.f32 %v477, 0.5
        %v496 = vtanh.pop %v480
        %v497 = vtanh.pop %v481
        %v498 = vtanh.pop %v482
        %v499 = vtanh.pop %v483
        %v500 = vtanh.pop %v484
        %v501 = vtanh.pop %v485
        %v502 = vtanh.pop %v486
        %v503 = vtanh.pop %v487
        %v504 = vtanh.pop %v488
        %v505 = vtanh.pop %v489
        %v506 = vtanh.pop %v490
        %v507 = vtanh.pop %v491
        %v508 = vtanh.pop %v492
        %v509 = vtanh.pop %v493
        %v510 = vtanh.pop %v494
        %v511 = vtanh.pop %v495
        %v512 = vmul.f32 %v496, 0.5
        %v513 = vmul.f32 %v497, 0.5
        %v514 = vmul.f32 %v498, 0.5
        %v515 = vmul.f32 %v499, 0.5
        %v516 = vmul.f32 %v500, 0.5
        %v517 = vmul.f32 %v501, 0.5
        %v518 = vmul.f32 %v502, 0.5
        %v519 = vmul.f32 %v503, 0.5
        %v520 = vmul.f32 %v504, 0.5
        %v521 = vmul.f32 %v505, 0.5
        %v522 = vmul.f32 %v506, 0.5
        %v523 = vmul.f32 %v507, 0.5
        %v524 = vmul.f32 %v508, 0.5
        %v525 = vmul.f32 %v509, 0.5
        %v526 = vmul.f32 %v510, 0.5
        %v527 = vmul.f32 %v511, 0.5
        %v528 = vadd.f32 %v512, 0.5
        %v529 = vadd.f32 %v513, 0.5
        %v530 = vadd.f32 %v514, 0.5
        %v531 = vadd.f32 %v515, 0.5
        %v532 = vadd.f32 %v516, 0.5
        %v533 = vadd.f32 %v517, 0.5
        %v534 = vadd.f32 %v518, 0.5
        %v535 = vadd.f32 %v519, 0.5
        %v536 = vadd.f32 %v520, 0.5
        %v537 = vadd.f32 %v521, 0.5
        %v538 = vadd.f32 %v522, 0.5
        %v539 = vadd.f32 %v523, 0.5
        %v540 = vadd.f32 %v524, 0.5
        %v541 = vadd.f32 %v525, 0.5
        %v542 = vadd.f32 %v526, 0.5
        %v543 = vadd.f32 %v527, 0.5
        %v544 = vld [vmem:[%s2] sm:$0xff]
        %v545 = vld [vmem:[%s2 + $0x8] sm:$0xff]
        %v546 = vld [vmem:[%s2 + $0x10] sm:$0xff]
        %v547 = vld [vmem:[%s2 + $0x18] sm:$0xff]
        %v548 = vld [vmem:[%s2 + $0x20] sm:$0xff]
        %v549 = vld [vmem:[%s2 + $0x28] sm:$0xff]
        %v550 = vld [vmem:[%s2 + $0x30] sm:$0xff]
        %v551 = vld [vmem:[%s2 + $0x38] sm:$0xff]
        %v552 = vld [vmem:[%s2 + $0x40] sm:$0xff]
        %v553 = vld [vmem:[%s2 + $0x48] sm:$0xff]
        %v554 = vld [vmem:[%s2 + $0x50] sm:$0xff]
        %v555 = vld [vmem:[%s2 + $0x58] sm:$0xff]
        %v556 = vld [vmem:[%s2 + $0x60] sm:$0xff]
        %v557 = vld [vmem:[%s2 + $0x68] sm:$0xff]
        %v558 = vld [vmem:[%s2 + $0x70] sm:$0xff]
        %v559 = vld [vmem:[%s2 + $0x78] sm:$0xff]
        %560 = vmatprep.subr.mxu0 0.0
        %561 = vmatpush1.msra.mxu0 %v544
        %562 = vmatprep.subr.mxu0 0.0
        %563 = vmatpush1.msra.mxu0 %v545
        %564 = vmatprep.subr.mxu0 0.0
        %565 = vmatpush1.msra.mxu0 %v546
        %566 = vmatprep.subr.mxu0 0.0
        %567 = vmatpush1.msra.mxu0 %v547
        %568 = vmatprep.subr.mxu0 0.0
        %569 = vmatpush1.msra.mxu0 %v548
        %570 = vmatprep.subr.mxu0 0.0
        %571 = vmatpush1.msra.mxu0 %v549
        %572 = vmatprep.subr.mxu0 0.0
        %573 = vmatpush1.msra.mxu0 %v550
        %574 = vmatprep.subr.mxu0 0.0
        %575 = vmatpush1.msra.mxu0 %v551
        %576 = vmatprep.subr.mxu0 0.0
        %577 = vmatpush1.msra.mxu0 %v552
        %578 = vmatprep.subr.mxu0 0.0
        %579 = vmatpush1.msra.mxu0 %v553
        %580 = vmatprep.subr.mxu0 0.0
        %581 = vmatpush1.msra.mxu0 %v554
        %582 = vmatprep.subr.mxu0 0.0
        %583 = vmatpush1.msra.mxu0 %v555
        %584 = vmatprep.subr.mxu0 0.0
        %585 = vmatpush1.msra.mxu0 %v556
        %586 = vmatprep.subr.mxu0 0.0
        %587 = vmatpush1.msra.mxu0 %v557
        %588 = vmatprep.subr.mxu0 0.0
        %589 = vmatpush1.msra.mxu0 %v558
        %590 = vmatprep.subr.mxu0 0.0
        %591 = vmatpush1.msra.mxu0 %v559
        %592 = vmatprep.subr.mxu0 0.0
        %593 = vmatpush1.msra.mxu0 0.0
        %594 = vmatprep.subr.mxu0 0.0
        %595 = vmatpush1.msra.mxu0 0.0
        %596 = vmatprep.subr.mxu0 0.0
        %597 = vmatpush1.msra.mxu0 0.0
        %598 = vmatprep.subr.mxu0 0.0
        %599 = vmatpush1.msra.mxu0 0.0
        %600 = vmatprep.subr.mxu0 0.0
        %601 = vmatpush1.msra.mxu0 0.0
        %602 = vmatprep.subr.mxu0 0.0
        %603 = vmatpush1.msra.mxu0 0.0
        %604 = vmatprep.subr.mxu0 0.0
        %605 = vmatpush1.msra.mxu0 0.0
        %606 = vmatprep.subr.mxu0 0.0
        %607 = vmatpush1.msra.mxu0 0.0
        %608 = vmatprep.subr.mxu0 0.0
        %609 = vmatpush1.msra.mxu0 0.0
        %610 = vmatprep.subr.mxu0 0.0
        %611 = vmatpush1.msra.mxu0 0.0
        %612 = vmatprep.subr.mxu0 0.0
        %613 = vmatpush1.msra.mxu0 0.0
        %614 = vmatprep.subr.mxu0 0.0
        %615 = vmatpush1.msra.mxu0 0.0
        %616 = vmatprep.subr.mxu0 0.0
        %617 = vmatpush1.msra.mxu0 0.0
        %618 = vmatprep.subr.mxu0 0.0
        %619 = vmatpush1.msra.mxu0 0.0
        %620 = vmatprep.subr.mxu0 0.0
        %621 = vmatpush1.msra.mxu0 0.0
        %622 = vmatprep.subr.mxu0 0.0
        %623 = vmatpush1.msra.mxu0 0.0
        %624 = vmatprep.mubr.f32.mxu0 0.0
        %625 = vmatmul.mubr.f32.gmra.mrb[0].mxu0 %v528
        %v626 = vpop.f32.mrb[0].mxu0
        %v627 = vadd.f32 0.0, %v626
        %v628 = vpop.f32.mrb[0].mxu0
        %629 = vmatprep.mubr.f32.mxu0 0.0
        %630 = vmatmul.mubr.f32.gmra.mrb[0].mxu0 %v529
        %v631 = vpop.f32.mrb[0].mxu0
        %v632 = vadd.f32 0.0, %v631
        %v633 = vpop.f32.mrb[0].mxu0
        %634 = vmatprep.mubr.f32.mxu0 0.0
        %635 = vmatmul.mubr.f32.gmra.mrb[0].mxu0 %v530
        %v636 = vpop.f32.mrb[0].mxu0
        %v637 = vadd.f32 0.0, %v636
        %v638 = vpop.f32.mrb[0].mxu0
        %639 = vmatprep.mubr.f32.mxu0 0.0
        %640 = vmatmul.mubr.f32.gmra.mrb[0].mxu0 %v531
        %v641 = vpop.f32.mrb[0].mxu0
        %v642 = vadd.f32 0.0, %v641
        %v643 = vpop.f32.mrb[0].mxu0
        %644 = vmatprep.mubr.f32.mxu0 0.0
        %645 = vmatmul.mubr.f32.gmra.mrb[0].mxu0 %v532
        %v646 = vpop.f32.mrb[0].mxu0
        %v647 = vadd.f32 0.0, %v646
        %v648 = vpop.f32.mrb[0].mxu0
        %649 = vmatprep.mubr.f32.mxu0 0.0
        %650 = vmatmul.mubr.f32.gmra.mrb[0].mxu0 %v533
        %v651 = vpop.f32.mrb[0].mxu0
        %v652 = vadd.f32 0.0, %v651
        %v653 = vpop.f32.mrb[0].mxu0
        %654 = vmatprep.mubr.f32.mxu0 0.0
        %655 = vmatmul.mubr.f32.gmra.mrb[0].mxu0 %v534
        %v656 = vpop.f32.mrb[0].mxu0
        %v657 = vadd.f32 0.0, %v656
        %v658 = vpop.f32.mrb[0].mxu0
        %659 = vmatprep.mubr.f32.mxu0 0.0
        %660 = vmatmul.mubr.f32.gmra.mrb[0].mxu0 %v535
        %v661 = vpop.f32.mrb[0].mxu0
        %v662 = vadd.f32 0.0, %v661
        %v663 = vpop.f32.mrb[0].mxu0
        %664 = vmatprep.mubr.f32.mxu0 0.0
        %665 = vmatmul.mubr.f32.gmra.mrb[0].mxu0 %v536
        %v666 = vpop.f32.mrb[0].mxu0
        %v667 = vadd.f32 0.0, %v666
        %v668 = vpop.f32.mrb[0].mxu0
        %669 = vmatprep.mubr.f32.mxu0 0.0
        %670 = vmatmul.mubr.f32.gmra.mrb[0].mxu0 %v537
        %v671 = vpop.f32.mrb[0].mxu0
        %v672 = vadd.f32 0.0, %v671
        %v673 = vpop.f32.mrb[0].mxu0
        %674 = vmatprep.mubr.f32.mxu0 0.0
        %675 = vmatmul.mubr.f32.gmra.mrb[0].mxu0 %v538
        %v676 = vpop.f32.mrb[0].mxu0
        %v677 = vadd.f32 0.0, %v676
        %v678 = vpop.f32.mrb[0].mxu0
        %679 = vmatprep.mubr.f32.mxu0 0.0
        %680 = vmatmul.mubr.f32.gmra.mrb[0].mxu0 %v539
        %v681 = vpop.f32.mrb[0].mxu0
        %v682 = vadd.f32 0.0, %v681
        %v683 = vpop.f32.mrb[0].mxu0
        %684 = vmatprep.mubr.f32.mxu0 0.0
        %685 = vmatmul.mubr.f32.gmra.mrb[0].mxu0 %v540
        %v686 = vpop.f32.mrb[0].mxu0
        %v687 = vadd.f32 0.0, %v686
        %v688 = vpop.f32.mrb[0].mxu0
        %689 = vmatprep.mubr.f32.mxu0 0.0
        %690 = vmatmul.mubr.f32.gmra.mrb[0].mxu0 %v541
        %v691 = vpop.f32.mrb[0].mxu0
        %v692 = vadd.f32 0.0, %v691
        %v693 = vpop.f32.mrb[0].mxu0
        %694 = vmatprep.mubr.f32.mxu0 0.0
        %695 = vmatmul.mubr.f32.gmra.mrb[0].mxu0 %v542
        %v696 = vpop.f32.mrb[0].mxu0
        %v697 = vadd.f32 0.0, %v696
        %v698 = vpop.f32.mrb[0].mxu0
        %699 = vmatprep.mubr.f32.mxu0 0.0
        %700 = vmatmul.mubr.f32.gmra.mrb[0].mxu0 %v543
        %v701 = vpop.f32.mrb[0].mxu0
        %v702 = vadd.f32 0.0, %v701
        %v703 = vpop.f32.mrb[0].mxu0
        %704 = vdwg.mxu0
        %v705 = vmul.f32 %v627, 0.5
        %v706 = vmul.f32 %v632, 0.5
        %v707 = vmul.f32 %v637, 0.5
        %v708 = vmul.f32 %v642, 0.5
        %v709 = vmul.f32 %v647, 0.5
        %v710 = vmul.f32 %v652, 0.5
        %v711 = vmul.f32 %v657, 0.5
        %v712 = vmul.f32 %v662, 0.5
        %v713 = vmul.f32 %v667, 0.5
        %v714 = vmul.f32 %v672, 0.5
        %v715 = vmul.f32 %v677, 0.5
        %v716 = vmul.f32 %v682, 0.5
        %v717 = vmul.f32 %v687, 0.5
        %v718 = vmul.f32 %v692, 0.5
        %v719 = vmul.f32 %v697, 0.5
        %v720 = vmul.f32 %v702, 0.5
        %v721 = vtanh.pop %v705
        %v722 = vtanh.pop %v706
        %v723 = vtanh.pop %v707
        %v724 = vtanh.pop %v708
        %v725 = vtanh.pop %v709
        %v726 = vtanh.pop %v710
        %v727 = vtanh.pop %v711
        %v728 = vtanh.pop %v712
        %v729 = vtanh.pop %v713
        %v730 = vtanh.pop %v714
        %v731 = vtanh.pop %v715
        %v732 = vtanh.pop %v716
        %v733 = vtanh.pop %v717
        %v734 = vtanh.pop %v718
        %v735 = vtanh.pop %v719
        %v736 = vtanh.pop %v720
        %v737 = vmul.f32 %v721, 0.5
        %v738 = vmul.f32 %v722, 0.5
        %v739 = vmul.f32 %v723, 0.5
        %v740 = vmul.f32 %v724, 0.5
        %v741 = vmul.f32 %v725, 0.5
        %v742 = vmul.f32 %v726, 0.5
        %v743 = vmul.f32 %v727, 0.5
        %v744 = vmul.f32 %v728, 0.5
        %v745 = vmul.f32 %v729, 0.5
        %v746 = vmul.f32 %v730, 0.5
        %v747 = vmul.f32 %v731, 0.5
        %v748 = vmul.f32 %v732, 0.5
        %v749 = vmul.f32 %v733, 0.5
        %v750 = vmul.f32 %v734, 0.5
        %v751 = vmul.f32 %v735, 0.5
        %v752 = vmul.f32 %v736, 0.5
        %v753 = vadd.f32 %v737, 0.5
        %v754 = vadd.f32 %v738, 0.5
        %v755 = vadd.f32 %v739, 0.5
        %v756 = vadd.f32 %v740, 0.5
        %v757 = vadd.f32 %v741, 0.5
        %v758 = vadd.f32 %v742, 0.5
        %v759 = vadd.f32 %v743, 0.5
        %v760 = vadd.f32 %v744, 0.5
        %v761 = vadd.f32 %v745, 0.5
        %v762 = vadd.f32 %v746, 0.5
        %v763 = vadd.f32 %v747, 0.5
        %v764 = vadd.f32 %v748, 0.5
        %v765 = vadd.f32 %v749, 0.5
        %v766 = vadd.f32 %v750, 0.5
        %v767 = vadd.f32 %v751, 0.5
        %v768 = vadd.f32 %v752, 0.5
        %v769 = vld [vmem:[%s3] sm:$0xff]
        %v770 = vld [vmem:[%s3 + $0x8] sm:$0xff]
        %v771 = vld [vmem:[%s3 + $0x10] sm:$0xff]
        %v772 = vld [vmem:[%s3 + $0x18] sm:$0xff]
        %v773 = vld [vmem:[%s3 + $0x20] sm:$0xff]
        %v774 = vld [vmem:[%s3 + $0x28] sm:$0xff]
        %v775 = vld [vmem:[%s3 + $0x30] sm:$0xff]
        %v776 = vld [vmem:[%s3 + $0x38] sm:$0xff]
        %v777 = vld [vmem:[%s3 + $0x40] sm:$0xff]
        %v778 = vld [vmem:[%s3 + $0x48] sm:$0xff]
        %v779 = vld [vmem:[%s3 + $0x50] sm:$0xff]
        %v780 = vld [vmem:[%s3 + $0x58] sm:$0xff]
        %v781 = vld [vmem:[%s3 + $0x60] sm:$0xff]
        %v782 = vld [vmem:[%s3 + $0x68] sm:$0xff]
        %v783 = vld [vmem:[%s3 + $0x70] sm:$0xff]
        %v784 = vld [vmem:[%s3 + $0x78] sm:$0xff]
        %v785 = vld [vmem:[%s4] sm:$0x1]
        %v787 = vlaneseq
        %v788 = vshrl.u32 %v787, 7
        %v789 = vsub.s32 0, %v788
        %v790 = vrot.slane %v785, %v789
        %792 = vmatprep.subr.mxu0 0.0
        %793 = vmatpush1.msra.mxu0 %v769
        %794 = vmatprep.subr.mxu0 0.0
        %795 = vmatpush1.msra.mxu0 %v770
        %796 = vmatprep.subr.mxu0 0.0
        %797 = vmatpush1.msra.mxu0 %v771
        %798 = vmatprep.subr.mxu0 0.0
        %799 = vmatpush1.msra.mxu0 %v772
        %800 = vmatprep.subr.mxu0 0.0
        %801 = vmatpush1.msra.mxu0 %v773
        %802 = vmatprep.subr.mxu0 0.0
        %803 = vmatpush1.msra.mxu0 %v774
        %804 = vmatprep.subr.mxu0 0.0
        %805 = vmatpush1.msra.mxu0 %v775
        %806 = vmatprep.subr.mxu0 0.0
        %807 = vmatpush1.msra.mxu0 %v776
        %808 = vmatprep.subr.mxu0 0.0
        %809 = vmatpush1.msra.mxu0 %v777
        %810 = vmatprep.subr.mxu0 0.0
        %811 = vmatpush1.msra.mxu0 %v778
        %812 = vmatprep.subr.mxu0 0.0
        %813 = vmatpush1.msra.mxu0 %v779
        %814 = vmatprep.subr.mxu0 0.0
        %815 = vmatpush1.msra.mxu0 %v780
        %816 = vmatprep.subr.mxu0 0.0
        %817 = vmatpush1.msra.mxu0 %v781
        %818 = vmatprep.subr.mxu0 0.0
        %819 = vmatpush1.msra.mxu0 %v782
        %820 = vmatprep.subr.mxu0 0.0
        %821 = vmatpush1.msra.mxu0 %v783
        %822 = vmatprep.subr.mxu0 0.0
        %823 = vmatpush1.msra.mxu0 %v784
        %824 = vmatprep.subr.mxu0 0.0
        %825 = vmatpush1.msra.mxu0 0.0
        %826 = vmatprep.subr.mxu0 0.0
        %827 = vmatpush1.msra.mxu0 0.0
        %828 = vmatprep.subr.mxu0 0.0
        %829 = vmatpush1.msra.mxu0 0.0
        %830 = vmatprep.subr.mxu0 0.0
        %831 = vmatpush1.msra.mxu0 0.0
        %832 = vmatprep.subr.mxu0 0.0
        %833 = vmatpush1.msra.mxu0 0.0
        %834 = vmatprep.subr.mxu0 0.0
        %835 = vmatpush1.msra.mxu0 0.0
        %836 = vmatprep.subr.mxu0 0.0
        %837 = vmatpush1.msra.mxu0 0.0
        %838 = vmatprep.subr.mxu0 0.0
        %839 = vmatpush1.msra.mxu0 0.0
        %840 = vmatprep.subr.mxu0 0.0
        %841 = vmatpush1.msra.mxu0 0.0
        %842 = vmatprep.subr.mxu0 0.0
        %843 = vmatpush1.msra.mxu0 0.0
        %844 = vmatprep.subr.mxu0 0.0
        %845 = vmatpush1.msra.mxu0 0.0
        %846 = vmatprep.subr.mxu0 0.0
        %847 = vmatpush1.msra.mxu0 0.0
        %848 = vmatprep.subr.mxu0 0.0
        %849 = vmatpush1.msra.mxu0 0.0
        %850 = vmatprep.subr.mxu0 0.0
        %851 = vmatpush1.msra.mxu0 0.0
        %852 = vmatprep.subr.mxu0 0.0
        %853 = vmatpush1.msra.mxu0 0.0
        %854 = vmatprep.subr.mxu0 0.0
        %855 = vmatpush1.msra.mxu0 0.0
        %856 = vmatprep.mubr.f32.mxu0 0.0
        %857 = vmatmul.mubr.f32.gmra.mrb[0].mxu0 %v753
        %v858 = vpop.f32.mrb[0].mxu0
        %v859 = vadd.f32 %v790, %v858
        %v860 = vpop.f32.mrb[0].mxu0
        %861 = vmatprep.mubr.f32.mxu0 0.0
        %862 = vmatmul.mubr.f32.gmra.mrb[0].mxu0 %v754
        %v863 = vpop.f32.mrb[0].mxu0
        %v864 = vadd.f32 %v790, %v863
        %v865 = vpop.f32.mrb[0].mxu0
        %866 = vmatprep.mubr.f32.mxu0 0.0
        %867 = vmatmul.mubr.f32.gmra.mrb[0].mxu0 %v755
        %v868 = vpop.f32.mrb[0].mxu0
        %v869 = vadd.f32 %v790, %v868
        %v870 = vpop.f32.mrb[0].mxu0
        %871 = vmatprep.mubr.f32.mxu0 0.0
        %872 = vmatmul.mubr.f32.gmra.mrb[0].mxu0 %v756
        %v873 = vpop.f32.mrb[0].mxu0
        %v874 = vadd.f32 %v790, %v873
        %v875 = vpop.f32.mrb[0].mxu0
        %876 = vmatprep.mubr.f32.mxu0 0.0
        %877 = vmatmul.mubr.f32.gmra.mrb[0].mxu0 %v757
        %v878 = vpop.f32.mrb[0].mxu0
        %v879 = vadd.f32 %v790, %v878
        %v880 = vpop.f32.mrb[0].mxu0
        %881 = vmatprep.mubr.f32.mxu0 0.0
        %882 = vmatmul.mubr.f32.gmra.mrb[0].mxu0 %v758
        %v883 = vpop.f32.mrb[0].mxu0
        %v884 = vadd.f32 %v790, %v883
        %v885 = vpop.f32.mrb[0].mxu0
        %886 = vmatprep.mubr.f32.mxu0 0.0
        %887 = vmatmul.mubr.f32.gmra.mrb[0].mxu0 %v759
        %v888 = vpop.f32.mrb[0].mxu0
        %v889 = vadd.f32 %v790, %v888
        %v890 = vpop.f32.mrb[0].mxu0
        %891 = vmatprep.mubr.f32.mxu0 0.0
        %892 = vmatmul.mubr.f32.gmra.mrb[0].mxu0 %v760
        %v893 = vpop.f32.mrb[0].mxu0
        %v894 = vadd.f32 %v790, %v893
        %v895 = vpop.f32.mrb[0].mxu0
        %896 = vmatprep.mubr.f32.mxu0 0.0
        %897 = vmatmul.mubr.f32.gmra.mrb[0].mxu0 %v761
        %v898 = vpop.f32.mrb[0].mxu0
        %v899 = vadd.f32 %v790, %v898
        %v900 = vpop.f32.mrb[0].mxu0
        %901 = vmatprep.mubr.f32.mxu0 0.0
        %902 = vmatmul.mubr.f32.gmra.mrb[0].mxu0 %v762
        %v903 = vpop.f32.mrb[0].mxu0
        %v904 = vadd.f32 %v790, %v903
        %v905 = vpop.f32.mrb[0].mxu0
        %906 = vmatprep.mubr.f32.mxu0 0.0
        %907 = vmatmul.mubr.f32.gmra.mrb[0].mxu0 %v763
        %v908 = vpop.f32.mrb[0].mxu0
        %v909 = vadd.f32 %v790, %v908
        %v910 = vpop.f32.mrb[0].mxu0
        %911 = vmatprep.mubr.f32.mxu0 0.0
        %912 = vmatmul.mubr.f32.gmra.mrb[0].mxu0 %v764
        %v913 = vpop.f32.mrb[0].mxu0
        %v914 = vadd.f32 %v790, %v913
        %v915 = vpop.f32.mrb[0].mxu0
        %916 = vmatprep.mubr.f32.mxu0 0.0
        %917 = vmatmul.mubr.f32.gmra.mrb[0].mxu0 %v765
        %v918 = vpop.f32.mrb[0].mxu0
        %v919 = vadd.f32 %v790, %v918
        %v920 = vpop.f32.mrb[0].mxu0
        %921 = vmatprep.mubr.f32.mxu0 0.0
        %922 = vmatmul.mubr.f32.gmra.mrb[0].mxu0 %v766
        %v923 = vpop.f32.mrb[0].mxu0
        %v924 = vadd.f32 %v790, %v923
        %v925 = vpop.f32.mrb[0].mxu0
        %926 = vmatprep.mubr.f32.mxu0 0.0
        %927 = vmatmul.mubr.f32.gmra.mrb[0].mxu0 %v767
        %v928 = vpop.f32.mrb[0].mxu0
        %v929 = vadd.f32 %v790, %v928
        %v930 = vpop.f32.mrb[0].mxu0
        %931 = vmatprep.mubr.f32.mxu0 0.0
        %932 = vmatmul.mubr.f32.gmra.mrb[0].mxu0 %v768
        %v933 = vpop.f32.mrb[0].mxu0
        %v934 = vadd.f32 %v790, %v933
        %v935 = vpop.f32.mrb[0].mxu0
        %936 = vdwg.mxu0
        %937 = vmax.xlane.f32.xlu0 %v859
        %v938 = vpop.xlane.xlu0 %937
        %939 = vmax.xlane.f32.xlu0 %v864
        %v940 = vpop.xlane.xlu0 %939
        %941 = vmax.xlane.f32.xlu0 %v869
        %v942 = vpop.xlane.xlu0 %941
        %943 = vmax.xlane.f32.xlu0 %v874
        %v944 = vpop.xlane.xlu0 %943
        %945 = vmax.xlane.f32.xlu0 %v879
        %v946 = vpop.xlane.xlu0 %945
        %947 = vmax.xlane.f32.xlu0 %v884
        %v948 = vpop.xlane.xlu0 %947
        %949 = vmax.xlane.f32.xlu0 %v889
        %v950 = vpop.xlane.xlu0 %949
        %951 = vmax.xlane.f32.xlu0 %v894
        %v952 = vpop.xlane.xlu0 %951
        %953 = vmax.xlane.f32.xlu0 %v899
        %v954 = vpop.xlane.xlu0 %953
        %955 = vmax.xlane.f32.xlu0 %v904
        %v956 = vpop.xlane.xlu0 %955
        %957 = vmax.xlane.f32.xlu0 %v909
        %v958 = vpop.xlane.xlu0 %957
        %959 = vmax.xlane.f32.xlu0 %v914
        %v960 = vpop.xlane.xlu0 %959
        %961 = vmax.xlane.f32.xlu0 %v919
        %v962 = vpop.xlane.xlu0 %961
        %963 = vmax.xlane.f32.xlu0 %v924
        %v964 = vpop.xlane.xlu0 %963
        %965 = vmax.xlane.f32.xlu0 %v929
        %v966 = vpop.xlane.xlu0 %965
        %967 = vmax.xlane.f32.xlu0 %v934
        %v968 = vpop.xlane.xlu0 %967
        %v969 = vsub.f32 %v859, %v938
        %v970 = vsub.f32 %v864, %v940
        %v971 = vsub.f32 %v869, %v942
        %v972 = vsub.f32 %v874, %v944
        %v973 = vsub.f32 %v879, %v946
        %v974 = vsub.f32 %v884, %v948
        %v975 = vsub.f32 %v889, %v950
        %v976 = vsub.f32 %v894, %v952
        %v977 = vsub.f32 %v899, %v954
        %v978 = vsub.f32 %v904, %v956
        %v979 = vsub.f32 %v909, %v958
        %v980 = vsub.f32 %v914, %v960
        %v981 = vsub.f32 %v919, %v962
        %v982 = vsub.f32 %v924, %v964
        %v983 = vsub.f32 %v929, %v966
        %v984 = vsub.f32 %v934, %v968
        %v985 = vmul.f32 %v969, 1.442695
        %v986 = vpow.pop %v985
        %v987 = vmul.f32 %v970, 1.442695
        %v988 = vpow.pop %v987
        %v989 = vmul.f32 %v971, 1.442695
        %v990 = vpow.pop %v989
        %v991 = vmul.f32 %v972, 1.442695
        %v992 = vpow.pop %v991
        %v993 = vmul.f32 %v973, 1.442695
        %v994 = vpow.pop %v993
        %v995 = vmul.f32 %v974, 1.442695
        %v996 = vpow.pop %v995
        %v997 = vmul.f32 %v975, 1.442695
        %v998 = vpow.pop %v997
        %v999 = vmul.f32 %v976, 1.442695
        %v1000 = vpow.pop %v999
        %v1001 = vmul.f32 %v977, 1.442695
        %v1002 = vpow.pop %v1001
        %v1003 = vmul.f32 %v978, 1.442695
        %v1004 = vpow.pop %v1003
        %v1005 = vmul.f32 %v979, 1.442695
        %v1006 = vpow.pop %v1005
        %v1007 = vmul.f32 %v980, 1.442695
        %v1008 = vpow.pop %v1007
        %v1009 = vmul.f32 %v981, 1.442695
        %v1010 = vpow.pop %v1009
        %v1011 = vmul.f32 %v982, 1.442695
        %v1012 = vpow.pop %v1011
        %v1013 = vmul.f32 %v983, 1.442695
        %v1014 = vpow.pop %v1013
        %v1015 = vmul.f32 %v984, 1.442695
        %v1016 = vpow.pop %v1015
        %v1017 = vld [vmem:[#allocation2] sm:$0xff]
        %v1018 = vld [vmem:[#allocation2 + $0x8] sm:$0xff]
        %v1019 = vld [vmem:[#allocation2 + $0x10] sm:$0xff]
        %v1020 = vld [vmem:[#allocation2 + $0x18] sm:$0xff]
        %v1021 = vld [vmem:[#allocation2 + $0x20] sm:$0xff]
        %v1022 = vld [vmem:[#allocation2 + $0x28] sm:$0xff]
        %v1023 = vld [vmem:[#allocation2 + $0x30] sm:$0xff]
        %v1024 = vld [vmem:[#allocation2 + $0x38] sm:$0xff]
        %v1025 = vld [vmem:[#allocation2 + $0x40] sm:$0xff]
        %v1026 = vld [vmem:[#allocation2 + $0x48] sm:$0xff]
        %v1027 = vld [vmem:[#allocation2 + $0x50] sm:$0xff]
        %v1028 = vld [vmem:[#allocation2 + $0x58] sm:$0xff]
        %v1029 = vld [vmem:[#allocation2 + $0x60] sm:$0xff]
        %v1030 = vld [vmem:[#allocation2 + $0x68] sm:$0xff]
        %v1031 = vld [vmem:[#allocation2 + $0x70] sm:$0xff]
        %v1032 = vld [vmem:[#allocation2 + $0x78] sm:$0xff]
        %1033 = vmatprep.subr.mxu0 0.0
        %1034 = vmatpush1.msra.mxu0 %v1017
        %1035 = vmatprep.subr.mxu0 0.0
        %1036 = vmatpush1.msra.mxu0 %v1018
        %1037 = vmatprep.subr.mxu0 0.0
        %1038 = vmatpush1.msra.mxu0 %v1019
        %1039 = vmatprep.subr.mxu0 0.0
        %1040 = vmatpush1.msra.mxu0 %v1020
        %1041 = vmatprep.subr.mxu0 0.0
        %1042 = vmatpush1.msra.mxu0 %v1021
        %1043 = vmatprep.subr.mxu0 0.0
        %1044 = vmatpush1.msra.mxu0 %v1022
        %1045 = vmatprep.subr.mxu0 0.0
        %1046 = vmatpush1.msra.mxu0 %v1023
        %1047 = vmatprep.subr.mxu0 0.0
        %1048 = vmatpush1.msra.mxu0 %v1024
        %1049 = vmatprep.subr.mxu0 0.0
        %1050 = vmatpush1.msra.mxu0 %v1025
        %1051 = vmatprep.subr.mxu0 0.0
        %1052 = vmatpush1.msra.mxu0 %v1026
        %1053 = vmatprep.subr.mxu0 0.0
        %1054 = vmatpush1.msra.mxu0 %v1027
        %1055 = vmatprep.subr.mxu0 0.0
        %1056 = vmatpush1.msra.mxu0 %v1028
        %1057 = vmatprep.subr.mxu0 0.0
        %1058 = vmatpush1.msra.mxu0 %v1029
        %1059 = vmatprep.subr.mxu0 0.0
        %1060 = vmatpush1.msra.mxu0 %v1030
        %1061 = vmatprep.subr.mxu0 0.0
        %1062 = vmatpush1.msra.mxu0 %v1031
        %1063 = vmatprep.subr.mxu0 0.0
        %1064 = vmatpush1.msra.mxu0 %v1032
        %1065 = vmatprep.subr.mxu0 0.0
        %1066 = vmatpush1.msra.mxu0 0.0
        %1067 = vmatprep.subr.mxu0 0.0
        %1068 = vmatpush1.msra.mxu0 0.0
        %1069 = vmatprep.subr.mxu0 0.0
        %1070 = vmatpush1.msra.mxu0 0.0
        %1071 = vmatprep.subr.mxu0 0.0
        %1072 = vmatpush1.msra.mxu0 0.0
        %1073 = vmatprep.subr.mxu0 0.0
        %1074 = vmatpush1.msra.mxu0 0.0
        %1075 = vmatprep.subr.mxu0 0.0
        %1076 = vmatpush1.msra.mxu0 0.0
        %1077 = vmatprep.subr.mxu0 0.0
        %1078 = vmatpush1.msra.mxu0 0.0
        %1079 = vmatprep.subr.mxu0 0.0
        %1080 = vmatpush1.msra.mxu0 0.0
        %1081 = vmatprep.subr.mxu0 0.0
        %1082 = vmatpush1.msra.mxu0 0.0
        %1083 = vmatprep.subr.mxu0 0.0
        %1084 = vmatpush1.msra.mxu0 0.0
        %1085 = vmatprep.subr.mxu0 0.0
        %1086 = vmatpush1.msra.mxu0 0.0
        %1087 = vmatprep.subr.mxu0 0.0
        %1088 = vmatpush1.msra.mxu0 0.0
        %1089 = vmatprep.subr.mxu0 0.0
        %1090 = vmatpush1.msra.mxu0 0.0
        %1091 = vmatprep.subr.mxu0 0.0
        %1092 = vmatpush1.msra.mxu0 0.0
        %1093 = vmatprep.subr.mxu0 0.0
        %1094 = vmatpush1.msra.mxu0 0.0
        %1095 = vmatprep.subr.mxu0 0.0
        %1096 = vmatpush1.msra.mxu0 0.0
        %1097 = vmatprep.mubr.f32.mxu0 0.0
        %1098 = vmatmul.mubr.f32.gmra.mrb[0].mxu0 %v986
        %v1099 = vpop.f32.mrb[0].mxu0
        %v1100 = vadd.f32 0.0, %v1099
        %v1101 = vpop.f32.mrb[0].mxu0
        %1102 = vmatprep.mubr.f32.mxu0 0.0
        %1103 = vmatmul.mubr.f32.gmra.mrb[0].mxu0 %v988
        %v1104 = vpop.f32.mrb[0].mxu0
        %v1105 = vadd.f32 0.0, %v1104
        %v1106 = vpop.f32.mrb[0].mxu0
        %1107 = vmatprep.mubr.f32.mxu0 0.0
        %1108 = vmatmul.mubr.f32.gmra.mrb[0].mxu0 %v990
        %v1109 = vpop.f32.mrb[0].mxu0
        %v1110 = vadd.f32 0.0, %v1109
        %v1111 = vpop.f32.mrb[0].mxu0
        %1112 = vmatprep.mubr.f32.mxu0 0.0
        %1113 = vmatmul.mubr.f32.gmra.mrb[0].mxu0 %v992
        %v1114 = vpop.f32.mrb[0].mxu0
        %v1115 = vadd.f32 0.0, %v1114
        %v1116 = vpop.f32.mrb[0].mxu0
        %1117 = vmatprep.mubr.f32.mxu0 0.0
        %1118 = vmatmul.mubr.f32.gmra.mrb[0].mxu0 %v994
        %v1119 = vpop.f32.mrb[0].mxu0
        %v1120 = vadd.f32 0.0, %v1119
        %v1121 = vpop.f32.mrb[0].mxu0
        %1122 = vmatprep.mubr.f32.mxu0 0.0
        %1123 = vmatmul.mubr.f32.gmra.mrb[0].mxu0 %v996
        %v1124 = vpop.f32.mrb[0].mxu0
        %v1125 = vadd.f32 0.0, %v1124
        %v1126 = vpop.f32.mrb[0].mxu0
        %1127 = vmatprep.mubr.f32.mxu0 0.0
        %1128 = vmatmul.mubr.f32.gmra.mrb[0].mxu0 %v998
        %v1129 = vpop.f32.mrb[0].mxu0
        %v1130 = vadd.f32 0.0, %v1129
        %v1131 = vpop.f32.mrb[0].mxu0
        %1132 = vmatprep.mubr.f32.mxu0 0.0
        %1133 = vmatmul.mubr.f32.gmra.mrb[0].mxu0 %v1000
        %v1134 = vpop.f32.mrb[0].mxu0
        %v1135 = vadd.f32 0.0, %v1134
        %v1136 = vpop.f32.mrb[0].mxu0
        %1137 = vmatprep.mubr.f32.mxu0 0.0
        %1138 = vmatmul.mubr.f32.gmra.mrb[0].mxu0 %v1002
        %v1139 = vpop.f32.mrb[0].mxu0
        %v1140 = vadd.f32 0.0, %v1139
        %v1141 = vpop.f32.mrb[0].mxu0
        %1142 = vmatprep.mubr.f32.mxu0 0.0
        %1143 = vmatmul.mubr.f32.gmra.mrb[0].mxu0 %v1004
        %v1144 = vpop.f32.mrb[0].mxu0
        %v1145 = vadd.f32 0.0, %v1144
        %v1146 = vpop.f32.mrb[0].mxu0
        %1147 = vmatprep.mubr.f32.mxu0 0.0
        %1148 = vmatmul.mubr.f32.gmra.mrb[0].mxu0 %v1006
        %v1149 = vpop.f32.mrb[0].mxu0
        %v1150 = vadd.f32 0.0, %v1149
        %v1151 = vpop.f32.mrb[0].mxu0
        %1152 = vmatprep.mubr.f32.mxu0 0.0
        %1153 = vmatmul.mubr.f32.gmra.mrb[0].mxu0 %v1008
        %v1154 = vpop.f32.mrb[0].mxu0
        %v1155 = vadd.f32 0.0, %v1154
        %v1156 = vpop.f32.mrb[0].mxu0
        %1157 = vmatprep.mubr.f32.mxu0 0.0
        %1158 = vmatmul.mubr.f32.gmra.mrb[0].mxu0 %v1010
        %v1159 = vpop.f32.mrb[0].mxu0
        %v1160 = vadd.f32 0.0, %v1159
        %v1161 = vpop.f32.mrb[0].mxu0
        %1162 = vmatprep.mubr.f32.mxu0 0.0
        %1163 = vmatmul.mubr.f32.gmra.mrb[0].mxu0 %v1012
        %v1164 = vpop.f32.mrb[0].mxu0
        %v1165 = vadd.f32 0.0, %v1164
        %v1166 = vpop.f32.mrb[0].mxu0
        %1167 = vmatprep.mubr.f32.mxu0 0.0
        %1168 = vmatmul.mubr.f32.gmra.mrb[0].mxu0 %v1014
        %v1169 = vpop.f32.mrb[0].mxu0
        %v1170 = vadd.f32 0.0, %v1169
        %v1171 = vpop.f32.mrb[0].mxu0
        %1172 = vmatprep.mubr.f32.mxu0 0.0
        %1173 = vmatmul.mubr.f32.gmra.mrb[0].mxu0 %v1016
        %v1174 = vpop.f32.mrb[0].mxu0
        %v1175 = vadd.f32 0.0, %v1174
        %v1176 = vpop.f32.mrb[0].mxu0
        %1177 = vdwg.mxu0
        %v1178 = vrcp.pop %v1100
        %v1179 = vrcp.pop %v1105
        %v1180 = vrcp.pop %v1110
        %v1181 = vrcp.pop %v1115
        %v1182 = vrcp.pop %v1120
        %v1183 = vrcp.pop %v1125
        %v1184 = vrcp.pop %v1130
        %v1185 = vrcp.pop %v1135
        %v1186 = vrcp.pop %v1140
        %v1187 = vrcp.pop %v1145
        %v1188 = vrcp.pop %v1150
        %v1189 = vrcp.pop %v1155
        %v1190 = vrcp.pop %v1160
        %v1191 = vrcp.pop %v1165
        %v1192 = vrcp.pop %v1170
        %v1193 = vrcp.pop %v1175
        %v1194 = vmul.f32 %v986, %v1178
        %v1195 = vmul.f32 %v988, %v1179
        %v1196 = vmul.f32 %v990, %v1180
        %v1197 = vmul.f32 %v992, %v1181
        %v1198 = vmul.f32 %v994, %v1182
        %v1199 = vmul.f32 %v996, %v1183
        %v1200 = vmul.f32 %v998, %v1184
        %v1201 = vmul.f32 %v1000, %v1185
        %v1202 = vmul.f32 %v1002, %v1186
        %v1203 = vmul.f32 %v1004, %v1187
        %v1204 = vmul.f32 %v1006, %v1188
        %v1205 = vmul.f32 %v1008, %v1189
        %v1206 = vmul.f32 %v1010, %v1190
        %v1207 = vmul.f32 %v1012, %v1191
        %v1208 = vmul.f32 %v1014, %v1192
        %v1209 = vmul.f32 %v1016, %v1193
        %1210 = vst [vmem:[%s260] sm:$0xff] %v1194
        %1211 = vst [vmem:[%s260 + $0x8] sm:$0xff] %v1195
        %1212 = vst [vmem:[%s260 + $0x10] sm:$0xff] %v1196
        %1213 = vst [vmem:[%s260 + $0x18] sm:$0xff] %v1197
        %1214 = vst [vmem:[%s260 + $0x20] sm:$0xff] %v1198
        %1215 = vst [vmem:[%s260 + $0x28] sm:$0xff] %v1199
        %1216 = vst [vmem:[%s260 + $0x30] sm:$0xff] %v1200
        %1217 = vst [vmem:[%s260 + $0x38] sm:$0xff] %v1201
        %1218 = vst [vmem:[%s260 + $0x40] sm:$0xff] %v1202
        %1219 = vst [vmem:[%s260 + $0x48] sm:$0xff] %v1203
        %1220 = vst [vmem:[%s260 + $0x50] sm:$0xff] %v1204
        %1221 = vst [vmem:[%s260 + $0x58] sm:$0xff] %v1205
        %1222 = vst [vmem:[%s260 + $0x60] sm:$0xff] %v1206
        %1223 = vst [vmem:[%s260 + $0x68] sm:$0xff] %v1207
        %1224 = vst [vmem:[%s260 + $0x70] sm:$0xff] %v1208
        %1225 = vst [vmem:[%s260 + $0x78] sm:$0xff] %v1209
        %s1226 = sand.u32 %s160, 1
        %s1227 = scalar_lea.sflag [#allocation4], %s1226
        %s1228 = sand.u32 %s160, 1
        %s1229 = smul.addr %s1228, 128
        %s1230 = scalar_lea.vmem [#allocation5], %s1229
        // Predicated region
        $region49: #{tpu_custom_call.1} parent=43 // pred_check
          %p1231 = pneg %p170
        $region50: #{tpu_custom_call.1} parent=43 // pred_check_branch
          %1233 = sbr.rel (%p1231) target = $region52
        $region51: #{tpu_custom_call.1} parent=43 // pred_region
          %s1234 = smul.u32 16, %s21
          %s1236 = ssub.s32 2048, 2048
          %1237 = vsyncadd %s1227, %s1236
          %s1238 = smul.addr %s1234, 128
          %s1239 = scalar_lea.hbm %s6, %s1238
          %s1240 = sshll.u32 %s1230, 4
          %s1241 = int_to_ptr.vmem [resolvable:$true] %s1240
          %1246 = dma.vmem_to_hbm [thread:$0]  %s1241, 2048, %s1239, %s1227, 128, 128, 8
        $region52: #{tpu_custom_call.1} parent=43 // pred_fallthru
          _
      $region44: #{tpu_custom_call.1} parent=5 // pred_fallthru
        _
      %p1247 = scmp.le.s32.totalorder 2, %s16
      // Predicated region
      $region53: #{tpu_custom_call.1} parent=5 // pred_check
        %p1248 = pneg %p1247
      $region54: #{tpu_custom_call.1} parent=5 // pred_check_branch
        %1250 = sbr.rel (%p1248) target = $region56
      $region55: #{tpu_custom_call.1} parent=5 // pred_region
        %s1251 = ssub.s32 %s16, 2
        // Predicated region
        $region57: #{tpu_custom_call.1} parent=55 // pred_check
          %p1252 = pneg %p176
        $region58: #{tpu_custom_call.1} parent=55 // pred_check_branch
          %1254 = sbr.rel (%p1252) target = $region60
        $region59: #{tpu_custom_call.1} parent=55 // pred_region
          %s1255 = sand.u32 %s161, 1
          %s1256 = scalar_lea.sflag [#allocation4], %s1255
          %s1257 = sand.u32 %s161, 1
          %s1258 = smul.addr %s1257, 128
          %s1259 = scalar_lea.vmem [#allocation5], %s1258
          %1260 = dma.done %s1256, 2048
        $region60: #{tpu_custom_call.1} parent=55 // pred_fallthru
          _
      $region56: #{tpu_custom_call.1} parent=5 // pred_fallthru
        _
    $region6: #{tpu_custom_call.1} parent=1 // loop_footer
      %s20 = sadd.s32 1, %s16
    $region7: #{tpu_custom_call.1} parent=1 // loop_footer_branch
      %15 = sbr.rel target = $region3
    $region8: #{tpu_custom_call.1} parent=1 // loop_exit
      _
    %1261 = vsyncpa [#allocation3], 1
    %s1262 = scalar_lea.sflag [#allocation3], 1
    %1263 = vsyncpa %s1262, 1
    %1264 = vsyncpa [#allocation4], 1
    %s1265 = scalar_lea.sflag [#allocation4], 1
    %1266 = vsyncpa %s1265, 1

</llo_original>
